<compile_context>
chip_gen: v6e
topology: v6e:2x2x1
jax: 0.10.0
libtpu: 0.0.40
codegen_flags: <defaults>
</compile_context>

<pallas_src>
import jax
import jax.numpy as jnp
from jax.experimental import pallas as pl
from jax.experimental.pallas import tpu as pltpu


def _round_up(x, m):
    return ((x + m - 1) // m) * m


def _mlp_kernel(xsn_ref, act_ref,
                w1t_ref, w1a_ref, b1_ref,
                w2t_ref, b2_ref,
                w3_ref, b3_ref,
                o_ref):
    """One batch tile, batch-on-lanes: every activation is (features, TB)."""
    cdt = w1t_ref.dtype                      # MXU input dtype (f32 or bf16 weights)

    xsn = xsn_ref[...]                       # (2S, TB), already cast to cdt by wrapper
    act = act_ref[...]                       # (1, TB) int32

    # ---- Layer 1: single MXU dot over [state|next_state] + VPU select for the one-hot.
    h1 = jnp.dot(w1t_ref[...], xsn, preferred_element_type=jnp.float32)   # (HP, TB) f32
    h1 = h1 + b1_ref[...]                                                 # (HP, 1) bcast
    w1a = w1a_ref[...]                                                    # (HP, A) f32
    # Trace-time loop: A is tiny (2 for CartPole).  For large action spaces this
    # should become a small one-hot matmul instead.
    for a in range(w1a.shape[1]):
        mask = (act == a).astype(jnp.float32)                             # (1, TB)
        h1 = h1 + w1a[:, a:a + 1] * mask                                  # VPU bcast MAC
    h1 = jnp.maximum(h1, 0.0)                                             # (HP, TB)

    # ---- Layer 2.
    h2 = jnp.dot(w2t_ref[...], h1.astype(cdt),
                 preferred_element_type=jnp.float32)                      # (H2P, TB)
    h2 = jnp.maximum(h2 + b2_ref[...], 0.0)

    # ---- Layer 3 (H//2 -> 1) + sigmoid: VPU multiply + sublane reduce.
    # No transpose needed: output is already the lane-dense (1, TB) row.
    logits = jnp.sum(h2 * w3_ref[...], axis=0, keepdims=True) + b3_ref[0, 0]
    o_ref[...] = jax.nn.sigmoid(logits)


def init_params(key, state_dim, action_dim, hidden_dim=128, dtype=jnp.float32):
    """PyTorch nn.Linear default init (U(-1/sqrt(fan_in))) on the true shapes, then
    stored transposed (for the batch-on-lanes kernel) and zero-padded.

    With dtype=jnp.bfloat16 the MXU-path weights (w1_sn_t, w2_t) are bf16; compare
    against a bf16 reference / loosen tolerances in that case."""
    s, a, h = state_dim, action_dim, hidden_dim
    h2 = hidden_dim // 2
    d_in = 2 * s + a
    hp = _round_up(h, 8)        # sublane-pad hidden (padded units: zero weight + bias)
    h2p = _round_up(h2, 8)
    ks = jax.random.split(key, 6)

    def lin(kw, kb, fan_in, fan_out):
        bound = 1.0 / (fan_in ** 0.5)
        w = jax.random.uniform(kw, (fan_in, fan_out), jnp.float32, -bound, bound)
        b = jax.random.uniform(kb, (1, fan_out), jnp.float32, -bound, bound)
        return w, b

    w1, b1 = lin(ks[0], ks[1], d_in, h)   # W1 rows ordered [state | action | next_state]
    w2, b2 = lin(ks[2], ks[3], h, h2)
    w3, b3 = lin(ks[4], ks[5], h2, 1)

    def pad2(x, shape):
        return jnp.zeros(shape, jnp.float32).at[:x.shape[0], :x.shape[1]].set(x)

    w1_sn = jnp.concatenate([w1[:s], w1[s + a:]], axis=0)       # (2S, H)
    w1_a = w1[s:s + a]                                          # (A, H)

    return dict(
        w1_sn_t=pad2(w1_sn, (2 * s, hp)).T.astype(dtype),       # (HP, 2S)  MXU path
        w1_a_t=pad2(w1_a, (a, hp)).T,                           # (HP, A)   f32 VPU path
        b1=pad2(b1, (1, hp)).T,                                 # (HP, 1)   f32
        w2_t=pad2(w2, (hp, h2p)).T.astype(dtype),               # (H2P, HP) MXU path
        b2=pad2(b2, (1, h2p)).T,                                # (H2P, 1)  f32
        w3=pad2(w3, (h2p, 1)),                                  # (H2P, 1)  f32 VPU path
        b3=b3,                                                  # (1, 1)    f32, SMEM
    )


def termination_predictor_forward(state, action, next_state, params, *, block_b=512):
    """TerminationPredictor.forward.

    state/next_state: (B, S) float; action: (B,) or (B, 1) int.  Returns (B, 1) f32.

    The grid tiles the batch in lane-dense blocks of `block_b` (>=128, multiple of
    128, clamped to the padded batch).  Raise block_b for large batches; on v7x keep
    the resulting n_tiles >= 2 (and even) so both TensorCores get work.
    """
    b, s = state.shape
    cdt = params["w1_sn_t"].dtype
    hp = params["w1_sn_t"].shape[0]
    h2p = params["w2_t"].shape[0]
    a_dim = params["w1_a_t"].shape[1]
    isz = jnp.dtype(cdt).itemsize

    tb = _round_up(max(128, min(int(block_b), _round_up(b, 128))), 128)
    b_pad = _round_up(b, tb)
    n_tiles = b_pad // tb

    # Wrapper-side prep: concat [state|next_state], cast to the MXU dtype, pad the
    # batch and flip to batch-on-lanes (features, B).
    x_sn = jnp.concatenate([state, next_state], axis=1).astype(cdt)      # (B, 2S)
    act = action.reshape(b).astype(jnp.int32)
    if b_pad != b:
        x_sn = jnp.pad(x_sn, ((0, b_pad - b), (0, 0)))
        act = jnp.pad(act, (0, b_pad - b))
    x_sn_t = x_sn.T                          # (2S, B_pad)  lane-dense over batch
    act_row = act.reshape(1, b_pad)          # (1, B_pad)

    def batch_spec(rows):
        return pl.BlockSpec((rows, tb), lambda i: (0, i))

    def const_spec(shape):
        return pl.BlockSpec(shape, lambda i: (0, 0))       # resident across the grid

    w_bytes = (params["w1_sn_t"].size * isz + params["w2_t"].size * isz
               + 4 * (params["w1_a_t"].size + params["b1"].size
                      + params["b2"].size + params["w3"].size + 1))
    flops = 2 * b_pad * (2 * s * hp + a_dim * hp + hp * h2p + h2p)
    bytes_accessed = int(b_pad * (2 * s * isz + 4 + 4) + w_bytes)
    cost = pl.CostEstimate(flops=int(flops), transcendentals=int(b_pad),
                           bytes_accessed=bytes_accessed)

    # Explicit scoped-VMEM budget (v7x: 64 MiB physical / 32 MiB default scoped):
    # double-buffered per-tile blocks + resident weights + f32 intermediates + headroom.
    vmem_est = (2 * (2 * s * tb * isz + 4 * tb + 4 * tb) + 2 * w_bytes
                + 6 * (hp + h2p) * tb * 4 + (4 << 20))
    vmem_limit = int(min(max(vmem_est, 16 << 20), 32 << 20))

    out = pl.pallas_call(
        _mlp_kernel,
        out_shape=jax.ShapeDtypeStruct((1, b_pad), jnp.float32),
        grid=(n_tiles,),
        in_specs=[
            batch_spec(2 * s),                                   # [state|next_state]^T
            batch_spec(1),                                       # action row (int32)
            const_spec((hp, 2 * s)),                             # w1_sn^T
            const_spec((hp, a_dim)),                             # w1_a^T (f32)
            const_spec((hp, 1)),                                 # b1
            const_spec((h2p, hp)),                               # w2^T
            const_spec((h2p, 1)),                                # b2
            const_spec((h2p, 1)),                                # w3
            pl.BlockSpec(memory_space=pltpu.MemorySpace.SMEM),   # b3 scalar
        ],
        out_specs=pl.BlockSpec((1, tb), lambda i: (0, i)),       # lane-dense row / tile
        compiler_params=pltpu.CompilerParams(
            # TODO(synk): consider pltpu.CORE_PARALLEL on v7x once n_tiles >= #cores.
            dimension_semantics=("parallel",),
            vmem_limit_bytes=vmem_limit),
        cost_estimate=cost,
    )(x_sn_t, act_row,
      params["w1_sn_t"], params["w1_a_t"], params["b1"],
      params["w2_t"], params["b2"], params["w3"], params["b3"])

    return out[0, :b].reshape(b, 1)


if __name__ == "__main__":
    # CartPole-like shapes: state_dim=4, action_dim=2; module default hidden_dim=128.
    STATE_DIM = 4
    ACTION_DIM = 2
    HIDDEN_DIM = 128
    BATCH = 8

    key = jax.random.PRNGKey(0)
    k_params, k_s, k_a, k_ns = jax.random.split(key, 4)

    params = init_params(k_params, STATE_DIM, ACTION_DIM, HIDDEN_DIM)
    state = jax.random.normal(k_s, (BATCH, STATE_DIM), jnp.float32)
    action = jax.random.randint(k_a, (BATCH,), 0, ACTION_DIM, jnp.int32)
    next_state = jax.random.normal(k_ns, (BATCH, STATE_DIM), jnp.float32)

    out = termination_predictor_forward(state, action, next_state, params)
    out = jax.block_until_ready(out)

    # Pure-JAX f32 reference (highest matmul precision).  Zero-padded weight rows /
    # columns contribute nothing, so this is exactly the original
    # sigmoid(MLP(concat([state, one_hot(action), next_state]))) forward pass.
    with jax.default_matmul_precision("float32"):
        onehot = jax.nn.one_hot(action, ACTION_DIM, dtype=jnp.float32)
        x_sn = jnp.concatenate([state, next_state], axis=1)
        h1 = jnp.maximum(x_sn @ params["w1_sn_t"].astype(jnp.float32).T
                         + onehot @ params["w1_a_t"].T
                         + params["b1"].T, 0.0)
        h2 = jnp.maximum(h1 @ params["w2_t"].astype(jnp.float32).T + params["b2"].T, 0.0)
        ref = jax.nn.sigmoid(h2 @ params["w3"] + params["b3"])

    assert out.shape == (BATCH, 1), out.shape
    err = float(jnp.max(jnp.abs(out - ref)))
    assert err < 2e-3, err
    print("KERNEL_OK")
</pallas_src>

<mosaic_0001>
module attributes {stable_mosaic.version = 11 : i64} {
  func.func @_mlp_kernel(%arg0: i32, %arg1: memref<8x128xf32, #tpu.memory_space<vmem>>, %arg2: memref<1x128xi32, #tpu.memory_space<vmem>>, %arg3: memref<128x8xf32, #tpu.memory_space<vmem>>, %arg4: memref<128x2xf32, #tpu.memory_space<vmem>>, %arg5: memref<128x1xf32, #tpu.memory_space<vmem>>, %arg6: memref<64x128xf32, #tpu.memory_space<vmem>>, %arg7: memref<64x1xf32, #tpu.memory_space<vmem>>, %arg8: memref<64x1xf32, #tpu.memory_space<vmem>>, %arg9: memref<1x1xf32, #tpu.memory_space<smem>>, %arg10: memref<1x128xf32, #tpu.memory_space<vmem>>) attributes {dimension_semantics = [#tpu.dimension_semantics<parallel>], iteration_bounds = array<i64: 1>, scalar_prefetch = 0 : i64, scratch_operands = 0 : i64, tpu.core_type = #tpu.core_type<tc>, window_params = [{transform_indices = @transform_0, window_bounds = array<i64: 8, 128>}, {transform_indices = @transform_1, window_bounds = array<i64: 1, 128>}, {pipeline_mode = #tpu.pipeline_mode<synchronous>, transform_indices = @transform_2, window_bounds = array<i64: 128, 8>}, {pipeline_mode = #tpu.pipeline_mode<synchronous>, transform_indices = @transform_3, window_bounds = array<i64: 128, 2>}, {pipeline_mode = #tpu.pipeline_mode<synchronous>, transform_indices = @transform_4, window_bounds = array<i64: 128, 1>}, {pipeline_mode = #tpu.pipeline_mode<synchronous>, transform_indices = @transform_5, window_bounds = array<i64: 64, 128>}, {pipeline_mode = #tpu.pipeline_mode<synchronous>, transform_indices = @transform_6, window_bounds = array<i64: 64, 1>}, {pipeline_mode = #tpu.pipeline_mode<synchronous>, transform_indices = @transform_7, window_bounds = array<i64: 64, 1>}, {transform_indices = @transform_8, window_bounds = array<i64: 1, 1>}, {transform_indices = @transform_9, window_bounds = array<i64: 1, 128>}]} {
    %c0 = arith.constant 0 : index
    %c0_0 = arith.constant 0 : index
    %0 = vector.load %arg1[%c0, %c0_0] : memref<8x128xf32, #tpu.memory_space<vmem>>, vector<8x128xf32>
    %c0_1 = arith.constant 0 : index
    %c0_2 = arith.constant 0 : index
    %1 = vector.load %arg2[%c0_1, %c0_2] : memref<1x128xi32, #tpu.memory_space<vmem>>, vector<1x128xi32>
    %c0_3 = arith.constant 0 : index
    %c0_4 = arith.constant 0 : index
    %2 = vector.load %arg3[%c0_3, %c0_4] : memref<128x8xf32, #tpu.memory_space<vmem>>, vector<128x8xf32>
    %cst = arith.constant dense<0.000000e+00> : vector<128x128xf32>
    %3 = tpu.matmul %2, %0, %cst {dimension_numbers = #tpu.dot_dimension_numbers<[1], [0], [0], [1], [0, 0, 1, 1], [], []>} : vector<128x8xf32>, vector<8x128xf32>, vector<128x128xf32> -> vector<128x128xf32>
    %c0_5 = arith.constant 0 : index
    %c0_6 = arith.constant 0 : index
    %4 = vector.load %arg5[%c0_5, %c0_6] : memref<128x1xf32, #tpu.memory_space<vmem>>, vector<128x1xf32>
    %5 = vector.broadcast %4 : vector<128x1xf32> to vector<128x128xf32>
    %6 = arith.addf %3, %5 : vector<128x128xf32>
    %c0_7 = arith.constant 0 : index
    %c0_8 = arith.constant 0 : index
    %7 = vector.load %arg4[%c0_7, %c0_8] : memref<128x2xf32, #tpu.memory_space<vmem>>, vector<128x2xf32>
    %c0_i32 = arith.constant 0 : i32
    %8 = vector.broadcast %c0_i32 : i32 to vector<1x128xi32>
    %9 = arith.cmpi eq, %1, %8 : vector<1x128xi32>
    %10 = arith.extui %9 : vector<1x128xi1> to vector<1x128xi32>
    %11 = arith.sitofp %10 : vector<1x128xi32> to vector<1x128xf32>
    %12 = vector.extract_strided_slice %7 {offsets = [0, 0], sizes = [128, 1], strides = [1, 1]} : vector<128x2xf32> to vector<128x1xf32>
    %13 = vector.broadcast %12 : vector<128x1xf32> to vector<128x128xf32>
    %14 = vector.broadcast %11 : vector<1x128xf32> to vector<128x128xf32>
    %15 = arith.mulf %13, %14 : vector<128x128xf32>
    %16 = arith.addf %6, %15 : vector<128x128xf32>
    %c1_i32 = arith.constant 1 : i32
    %17 = vector.broadcast %c1_i32 : i32 to vector<1x128xi32>
    %18 = arith.cmpi eq, %1, %17 : vector<1x128xi32>
    %19 = arith.extui %18 : vector<1x128xi1> to vector<1x128xi32>
    %20 = arith.sitofp %19 : vector<1x128xi32> to vector<1x128xf32>
    %21 = vector.extract_strided_slice %7 {offsets = [0, 1], sizes = [128, 1], strides = [1, 1]} : vector<128x2xf32> to vector<128x1xf32>
    %22 = vector.broadcast %21 : vector<128x1xf32> to vector<128x128xf32>
    %23 = vector.broadcast %20 : vector<1x128xf32> to vector<128x128xf32>
    %24 = arith.mulf %22, %23 : vector<128x128xf32>
    %25 = arith.addf %16, %24 : vector<128x128xf32>
    %cst_9 = arith.constant 0.000000e+00 : f32
    %26 = vector.broadcast %cst_9 : f32 to vector<128x128xf32>
    %27 = arith.maximumf %25, %26 : vector<128x128xf32>
    %c0_10 = arith.constant 0 : index
    %c0_11 = arith.constant 0 : index
    %28 = vector.load %arg6[%c0_10, %c0_11] : memref<64x128xf32, #tpu.memory_space<vmem>>, vector<64x128xf32>
    %cst_12 = arith.constant dense<0.000000e+00> : vector<64x128xf32>
    %29 = tpu.matmul %28, %27, %cst_12 {dimension_numbers = #tpu.dot_dimension_numbers<[1], [0], [0], [1], [0, 0, 1, 1], [], []>} : vector<64x128xf32>, vector<128x128xf32>, vector<64x128xf32> -> vector<64x128xf32>
    %c0_13 = arith.constant 0 : index
    %c0_14 = arith.constant 0 : index
    %30 = vector.load %arg7[%c0_13, %c0_14] : memref<64x1xf32, #tpu.memory_space<vmem>>, vector<64x1xf32>
    %31 = vector.broadcast %30 : vector<64x1xf32> to vector<64x128xf32>
    %32 = arith.addf %29, %31 : vector<64x128xf32>
    %cst_15 = arith.constant 0.000000e+00 : f32
    %33 = vector.broadcast %cst_15 : f32 to vector<64x128xf32>
    %34 = arith.maximumf %32, %33 : vector<64x128xf32>
    %c0_16 = arith.constant 0 : index
    %c0_17 = arith.constant 0 : index
    %35 = vector.load %arg8[%c0_16, %c0_17] : memref<64x1xf32, #tpu.memory_space<vmem>>, vector<64x1xf32>
    %36 = vector.broadcast %35 : vector<64x1xf32> to vector<64x128xf32>
    %37 = arith.mulf %34, %36 : vector<64x128xf32>
    %cst_18 = arith.constant dense<0.000000e+00> : vector<128xf32>
    %38 = vector.multi_reduction <add>, %37, %cst_18 [0] : vector<64x128xf32> to vector<128xf32>
    %39 = vector.shape_cast %38 : vector<128xf32> to vector<1x128xf32>
    %c0_19 = arith.constant 0 : index
    %c0_20 = arith.constant 0 : index
    %40 = memref.load %arg9[%c0_19, %c0_20] : memref<1x1xf32, #tpu.memory_space<smem>>
    %41 = vector.broadcast %40 : f32 to vector<1x128xf32>
    %42 = arith.addf %39, %41 : vector<1x128xf32>
    %43 = arith.negf %42 : vector<1x128xf32>
    %44 = math.exp %43 : vector<1x128xf32>
    %cst_21 = arith.constant 1.000000e+00 : f32
    %45 = vector.broadcast %cst_21 : f32 to vector<1x128xf32>
    %46 = arith.addf %45, %44 : vector<1x128xf32>
    %47 = arith.divf %45, %46 : vector<1x128xf32>
    %c0_22 = arith.constant 0 : index
    %c0_23 = arith.constant 0 : index
    %48 = vector.load %arg10[%c0_22, %c0_23] : memref<1x128xf32, #tpu.memory_space<vmem>>, vector<1x128xf32>
    tpu.vector_store %arg10[%c0_22, %c0_23], %47 {strides = array<i32>} : memref<1x128xf32, #tpu.memory_space<vmem>>, vector<1x128xf32>,
    return
  }
  func.func @transform_0(%arg0: i32) -> (i32, i32) {
    %c0_i32 = arith.constant 0 : i32
    %c0_i32_0 = arith.constant 0 : i32
    return %c0_i32, %arg0 : i32, i32
  }
  func.func @transform_1(%arg0: i32) -> (i32, i32) {
    %c0_i32 = arith.constant 0 : i32
    %c0_i32_0 = arith.constant 0 : i32
    return %c0_i32, %arg0 : i32, i32
  }
  func.func @transform_2(%arg0: i32) -> (i32, i32) {
    %c0_i32 = arith.constant 0 : i32
    %c0_i32_0 = arith.constant 0 : i32
    %c0_i32_1 = arith.constant 0 : i32
    return %c0_i32, %c0_i32_0 : i32, i32
  }
  func.func @transform_3(%arg0: i32) -> (i32, i32) {
    %c0_i32 = arith.constant 0 : i32
    %c0_i32_0 = arith.constant 0 : i32
    %c0_i32_1 = arith.constant 0 : i32
    return %c0_i32, %c0_i32_0 : i32, i32
  }
  func.func @transform_4(%arg0: i32) -> (i32, i32) {
    %c0_i32 = arith.constant 0 : i32
    %c0_i32_0 = arith.constant 0 : i32
    %c0_i32_1 = arith.constant 0 : i32
    return %c0_i32, %c0_i32_0 : i32, i32
  }
  func.func @transform_5(%arg0: i32) -> (i32, i32) {
    %c0_i32 = arith.constant 0 : i32
    %c0_i32_0 = arith.constant 0 : i32
    %c0_i32_1 = arith.constant 0 : i32
    return %c0_i32, %c0_i32_0 : i32, i32
  }
  func.func @transform_6(%arg0: i32) -> (i32, i32) {
    %c0_i32 = arith.constant 0 : i32
    %c0_i32_0 = arith.constant 0 : i32
    %c0_i32_1 = arith.constant 0 : i32
    return %c0_i32, %c0_i32_0 : i32, i32
  }
  func.func @transform_7(%arg0: i32) -> (i32, i32) {
    %c0_i32 = arith.constant 0 : i32
    %c0_i32_0 = arith.constant 0 : i32
    %c0_i32_1 = arith.constant 0 : i32
    return %c0_i32, %c0_i32_0 : i32, i32
  }
  func.func @transform_8(%arg0: i32) -> (i32, i32) {
    %c0_i32 = arith.constant 0 : i32
    %c0_i32_0 = arith.constant 0 : i32
    %c0_i32_1 = arith.constant 0 : i32
    return %c0_i32, %c0_i32_0 : i32, i32
  }
  func.func @transform_9(%arg0: i32) -> (i32, i32) {
    %c0_i32 = arith.constant 0 : i32
    %c0_i32_0 = arith.constant 0 : i32
    return %c0_i32, %arg0 : i32, i32
  }
}

</mosaic_0001>

<llo_original>
// kernel: tpu_custom_call.1
$region0: #{tpu_custom_call.1}
  #allocation0 [shape = 'u32[]', space=smem, size = 0x4, offset = 0x4, fixed_abs, tag = 'smem constant byte address 0x4 - core index']
  #allocation1 [shape = 'u32[144,128]{1,0:T(1,128)}', space=vmem, size = 0x12000, scoped, tag = 'internal scratch']
  #allocation2 [shape = 'f32[1,1]{1,0:T(1,128)S(6)}', space=smem, size = 0x200, scoped, tag = 'scoped memory for tpu_custom_call.1']
  %s0 = inlined_call_operand.vmem [shape: f32[8,128], index: 0, kind: input, shape index: {}]
  %s1 = inlined_call_operand.vmem [shape: s32[1,128], index: 1, kind: input, shape index: {}]
  %s2 = inlined_call_operand.vmem [shape: f32[128,8], index: 2, kind: input, shape index: {}]
  %s3 = inlined_call_operand.vmem [shape: f32[128,2], index: 3, kind: input, shape index: {}]
  %s4 = inlined_call_operand.vmem [shape: f32[128,1], index: 4, kind: input, shape index: {}]
  %s5 = inlined_call_operand.vmem [shape: f32[64,128], index: 5, kind: input, shape index: {}]
  %s6 = inlined_call_operand.vmem [shape: f32[64,1], index: 6, kind: input, shape index: {}]
  %s7 = inlined_call_operand.vmem [shape: f32[64,1], index: 7, kind: input, shape index: {}]
  %s8 = inlined_call_operand.<no memory space> [shape: f32[1,1], index: 8, kind: input, shape index: {}]
  %s9 = inlined_call_operand.hbm [shape: f32[1,128], index: 9, kind: output, shape index: {}]
  %s10 = sld [smem:[#allocation0]]
  $region46: #{tpu_custom_call.1} parent=0
    _
  %s12 = ssub.s32 1, %s10
  %s13 = scalar_select 0, %s12, %s10
  %14 = sst [smem:[#allocation2]] %s8
  $region1: #{tpu_custom_call.1} parent=0
    #allocation3 [shape = 'u8[512]{0}', space=vmem, size = 0x400, scoped, tag = 'output window, operand 0, single buffered']
    #allocation4 [shape = 's32[1]{0}', space=sflag, size = 0x4, scoped, tag = 'scoped memory for tpu_custom_call.1']
    %15 = vsyncpa [#allocation4], 0
    // Predicated region
    $region2: #{tpu_custom_call.1} parent=1 // pred_check
      _
    $region3: #{tpu_custom_call.1} parent=1 // pred_check_branch
      %17 = sbr.rel (0) target = $region5
    $region4: #{tpu_custom_call.1} parent=1 // pred_region
      _
    $region5: #{tpu_custom_call.1} parent=1 // pred_fallthru
      _
    // Predicated region
    $region6: #{tpu_custom_call.1} parent=1 // pred_check
      _
    $region7: #{tpu_custom_call.1} parent=1 // pred_check_branch
      %19 = sbr.rel (0) target = $region9
    $region8: #{tpu_custom_call.1} parent=1 // pred_region
      _
    $region9: #{tpu_custom_call.1} parent=1 // pred_fallthru
      _
    // Predicated region
    $region10: #{tpu_custom_call.1} parent=1 // pred_check
      _
    $region11: #{tpu_custom_call.1} parent=1 // pred_check_branch
      %21 = sbr.rel (0) target = $region13
    $region12: #{tpu_custom_call.1} parent=1 // pred_region
      _
    $region13: #{tpu_custom_call.1} parent=1 // pred_fallthru
      _
    // Predicated region
    $region14: #{tpu_custom_call.1} parent=1 // pred_check
      _
    $region15: #{tpu_custom_call.1} parent=1 // pred_check_branch
      %23 = sbr.rel (0) target = $region17
    $region16: #{tpu_custom_call.1} parent=1 // pred_region
      _
    $region17: #{tpu_custom_call.1} parent=1 // pred_fallthru
      _
    // Predicated region
    $region18: #{tpu_custom_call.1} parent=1 // pred_check
      _
    $region19: #{tpu_custom_call.1} parent=1 // pred_check_branch
      %25 = sbr.rel (0) target = $region21
    $region20: #{tpu_custom_call.1} parent=1 // pred_region
      _
    $region21: #{tpu_custom_call.1} parent=1 // pred_fallthru
      _
    // Predicated region
    $region22: #{tpu_custom_call.1} parent=1 // pred_check
      _
    $region23: #{tpu_custom_call.1} parent=1 // pred_check_branch
      %27 = sbr.rel (0) target = $region25
    $region24: #{tpu_custom_call.1} parent=1 // pred_region
      _
    $region25: #{tpu_custom_call.1} parent=1 // pred_fallthru
      _
    // Predicated region
    $region26: #{tpu_custom_call.1} parent=1 // pred_check
      _
    $region27: #{tpu_custom_call.1} parent=1 // pred_check_branch
      %29 = sbr.rel (0) target = $region29
    $region28: #{tpu_custom_call.1} parent=1 // pred_region
      _
    $region29: #{tpu_custom_call.1} parent=1 // pred_fallthru
      _
    // Predicated region
    $region30: #{tpu_custom_call.1} parent=1 // pred_check
      _
    $region31: #{tpu_custom_call.1} parent=1 // pred_check_branch
      %31 = sbr.rel (0) target = $region33
    $region32: #{tpu_custom_call.1} parent=1 // pred_region
      _
    $region33: #{tpu_custom_call.1} parent=1 // pred_fallthru
      _
    // Predicated region
    $region34: #{tpu_custom_call.1} parent=1 // pred_check
      _
    $region35: #{tpu_custom_call.1} parent=1 // pred_check_branch
      %33 = sbr.rel (0) target = $region37
    $region36: #{tpu_custom_call.1} parent=1 // pred_region
      _
    $region37: #{tpu_custom_call.1} parent=1 // pred_fallthru
      _
    %v34 = vld [vmem:[%s0] sm:$0xff]
    %v35 = vld [vmem:[%s1] sm:$0x1]
    %v36 = vld [vmem:[%s2] sm:$0xff]
    %v37 = vld [vmem:[%s2 + $0x8] sm:$0xff]
    %v38 = vld [vmem:[%s2 + $0x10] sm:$0xff]
    %v39 = vld [vmem:[%s2 + $0x18] sm:$0xff]
    %v40 = vld [vmem:[%s2 + $0x20] sm:$0xff]
    %v41 = vld [vmem:[%s2 + $0x28] sm:$0xff]
    %v42 = vld [vmem:[%s2 + $0x30] sm:$0xff]
    %v43 = vld [vmem:[%s2 + $0x38] sm:$0xff]
    %v44 = vld [vmem:[%s2 + $0x40] sm:$0xff]
    %v45 = vld [vmem:[%s2 + $0x48] sm:$0xff]
    %v46 = vld [vmem:[%s2 + $0x50] sm:$0xff]
    %v47 = vld [vmem:[%s2 + $0x58] sm:$0xff]
    %v48 = vld [vmem:[%s2 + $0x60] sm:$0xff]
    %v49 = vld [vmem:[%s2 + $0x68] sm:$0xff]
    %v50 = vld [vmem:[%s2 + $0x70] sm:$0xff]
    %v51 = vld [vmem:[%s2 + $0x78] sm:$0xff]
    %v52 = vld [vmem:[%s4] sm:$0xff]
    %v53 = vld [vmem:[%s4 + $0x8] sm:$0xff]
    %v54 = vld [vmem:[%s4 + $0x10] sm:$0xff]
    %v55 = vld [vmem:[%s4 + $0x18] sm:$0xff]
    %v56 = vld [vmem:[%s4 + $0x20] sm:$0xff]
    %v57 = vld [vmem:[%s4 + $0x28] sm:$0xff]
    %v58 = vld [vmem:[%s4 + $0x30] sm:$0xff]
    %v59 = vld [vmem:[%s4 + $0x38] sm:$0xff]
    %v60 = vld [vmem:[%s4 + $0x40] sm:$0xff]
    %v61 = vld [vmem:[%s4 + $0x48] sm:$0xff]
    %v62 = vld [vmem:[%s4 + $0x50] sm:$0xff]
    %v63 = vld [vmem:[%s4 + $0x58] sm:$0xff]
    %v64 = vld [vmem:[%s4 + $0x60] sm:$0xff]
    %v65 = vld [vmem:[%s4 + $0x68] sm:$0xff]
    %v66 = vld [vmem:[%s4 + $0x70] sm:$0xff]
    %v67 = vld [vmem:[%s4 + $0x78] sm:$0xff]
    %69 = vset.pattern.permute.xlu0 0
    %70 = vperm.xlu0 %69, %v52
    %v71 = vpop.permute.xlu0 %70
    %74 = vset.pattern.permute.xlu0 0
    %75 = vperm.xlu0 %74, %v53
    %v76 = vpop.permute.xlu0 %75
    %79 = vset.pattern.permute.xlu0 0
    %80 = vperm.xlu0 %79, %v54
    %v81 = vpop.permute.xlu0 %80
    %84 = vset.pattern.permute.xlu0 0
    %85 = vperm.xlu0 %84, %v55
    %v86 = vpop.permute.xlu0 %85
    %89 = vset.pattern.permute.xlu0 0
    %90 = vperm.xlu0 %89, %v56
    %v91 = vpop.permute.xlu0 %90
    %94 = vset.pattern.permute.xlu0 0
    %95 = vperm.xlu0 %94, %v57
    %v96 = vpop.permute.xlu0 %95
    %99 = vset.pattern.permute.xlu0 0
    %100 = vperm.xlu0 %99, %v58
    %v101 = vpop.permute.xlu0 %100
    %104 = vset.pattern.permute.xlu0 0
    %105 = vperm.xlu0 %104, %v59
    %v106 = vpop.permute.xlu0 %105
    %109 = vset.pattern.permute.xlu0 0
    %110 = vperm.xlu0 %109, %v60
    %v111 = vpop.permute.xlu0 %110
    %114 = vset.pattern.permute.xlu0 0
    %115 = vperm.xlu0 %114, %v61
    %v116 = vpop.permute.xlu0 %115
    %119 = vset.pattern.permute.xlu0 0
    %120 = vperm.xlu0 %119, %v62
    %v121 = vpop.permute.xlu0 %120
    %124 = vset.pattern.permute.xlu0 0
    %125 = vperm.xlu0 %124, %v63
    %v126 = vpop.permute.xlu0 %125
    %129 = vset.pattern.permute.xlu0 0
    %130 = vperm.xlu0 %129, %v64
    %v131 = vpop.permute.xlu0 %130
    %134 = vset.pattern.permute.xlu0 0
    %135 = vperm.xlu0 %134, %v65
    %v136 = vpop.permute.xlu0 %135
    %139 = vset.pattern.permute.xlu0 0
    %140 = vperm.xlu0 %139, %v66
    %v141 = vpop.permute.xlu0 %140
    %144 = vset.pattern.permute.xlu0 0
    %145 = vperm.xlu0 %144, %v67
    %v146 = vpop.permute.xlu0 %145
    %vm148 = vcmask 64512
    %v150 = vsel %vm148, %v36, 0
    %v153 = vsel %vm148, %v37, 0
    %v156 = vsel %vm148, %v38, 0
    %v159 = vsel %vm148, %v39, 0
    %v162 = vsel %vm148, %v40, 0
    %v165 = vsel %vm148, %v41, 0
    %v168 = vsel %vm148, %v42, 0
    %v171 = vsel %vm148, %v43, 0
    %v174 = vsel %vm148, %v44, 0
    %v177 = vsel %vm148, %v45, 0
    %v180 = vsel %vm148, %v46, 0
    %v183 = vsel %vm148, %v47, 0
    %v186 = vsel %vm148, %v48, 0
    %v189 = vsel %vm148, %v49, 0
    %v192 = vsel %vm148, %v50, 0
    %v195 = vsel %vm148, %v51, 0
    %197 = vmatprep.subr.mxu0 0.0
    %198 = vmatpush1.msra.mxu0 0.0
    %199 = vmatprep.subr.mxu0 0.0
    %200 = vmatpush1.msra.mxu0 0.0
    %201 = vmatprep.subr.mxu0 0.0
    %202 = vmatpush1.msra.mxu0 0.0
    %203 = vmatprep.subr.mxu0 0.0
    %204 = vmatpush1.msra.mxu0 0.0
    %205 = vmatprep.subr.mxu0 0.0
    %206 = vmatpush1.msra.mxu0 0.0
    %207 = vmatprep.subr.mxu0 0.0
    %208 = vmatpush1.msra.mxu0 0.0
    %209 = vmatprep.subr.mxu0 0.0
    %210 = vmatpush1.msra.mxu0 0.0
    %211 = vmatprep.subr.mxu0 0.0
    %212 = vmatpush1.msra.mxu0 0.0
    %213 = vmatprep.subr.mxu0 0.0
    %214 = vmatpush1.msra.mxu0 0.0
    %215 = vmatprep.subr.mxu0 0.0
    %216 = vmatpush1.msra.mxu0 0.0
    %217 = vmatprep.subr.mxu0 0.0
    %218 = vmatpush1.msra.mxu0 0.0
    %219 = vmatprep.subr.mxu0 0.0
    %220 = vmatpush1.msra.mxu0 0.0
    %221 = vmatprep.subr.mxu0 0.0
    %222 = vmatpush1.msra.mxu0 0.0
    %223 = vmatprep.subr.mxu0 0.0
    %224 = vmatpush1.msra.mxu0 0.0
    %225 = vmatprep.subr.mxu0 0.0
    %226 = vmatpush1.msra.mxu0 0.0
    %227 = vmatprep.subr.mxu0 0.0
    %228 = vmatpush1.msra.mxu0 %v34
    %229 = vmatprep.subr.mxu0 0.0
    %230 = vmatpush2.msra.mxu0 0.0
    %231 = vmatprep.subr.mxu0 0.0
    %232 = vmatpush2.msra.mxu0 0.0
    %233 = vmatprep.subr.mxu0 0.0
    %234 = vmatpush2.msra.mxu0 0.0
    %235 = vmatprep.subr.mxu0 0.0
    %236 = vmatpush2.msra.mxu0 0.0
    %237 = vmatprep.subr.mxu0 0.0
    %238 = vmatpush2.msra.mxu0 0.0
    %239 = vmatprep.subr.mxu0 0.0
    %240 = vmatpush2.msra.mxu0 0.0
    %241 = vmatprep.subr.mxu0 0.0
    %242 = vmatpush2.msra.mxu0 0.0
    %243 = vmatprep.subr.mxu0 0.0
    %244 = vmatpush2.msra.mxu0 0.0
    %245 = vmatprep.subr.mxu0 0.0
    %246 = vmatpush2.msra.mxu0 0.0
    %247 = vmatprep.subr.mxu0 0.0
    %248 = vmatpush2.msra.mxu0 0.0
    %249 = vmatprep.subr.mxu0 0.0
    %250 = vmatpush2.msra.mxu0 0.0
    %251 = vmatprep.subr.mxu0 0.0
    %252 = vmatpush2.msra.mxu0 0.0
    %253 = vmatprep.subr.mxu0 0.0
    %254 = vmatpush2.msra.mxu0 0.0
    %255 = vmatprep.subr.mxu0 0.0
    %256 = vmatpush2.msra.mxu0 0.0
    %257 = vmatprep.subr.mxu0 0.0
    %258 = vmatpush2.msra.mxu0 0.0
    %259 = vmatprep.subr.mxu0 0.0
    %260 = vmatpush2.msra.mxu0 0.0
    %261 = vmatprep.mubr.f32.mxu0 0.0
    %262 = vmatmul.mubr.f32.gmra.mxu0 %v150
    %v263 = vpop.f32.mrf.mxu0
    %v264 = vadd.f32 %v71, %v263
    %v265 = vpop.f32.mrf.mxu0
    %266 = vmatprep.mubr.f32.mxu0 0.0
    %267 = vmatmul.mubr.f32.gmra.mxu0 %v153
    %v268 = vpop.f32.mrf.mxu0
    %v269 = vadd.f32 %v76, %v268
    %v270 = vpop.f32.mrf.mxu0
    %271 = vmatprep.mubr.f32.mxu0 0.0
    %272 = vmatmul.mubr.f32.gmra.mxu0 %v156
    %v273 = vpop.f32.mrf.mxu0
    %v274 = vadd.f32 %v81, %v273
    %v275 = vpop.f32.mrf.mxu0
    %276 = vmatprep.mubr.f32.mxu0 0.0
    %277 = vmatmul.mubr.f32.gmra.mxu0 %v159
    %v278 = vpop.f32.mrf.mxu0
    %v279 = vadd.f32 %v86, %v278
    %v280 = vpop.f32.mrf.mxu0
    %281 = vmatprep.mubr.f32.mxu0 0.0
    %282 = vmatmul.mubr.f32.gmra.mxu0 %v162
    %v283 = vpop.f32.mrf.mxu0
    %v284 = vadd.f32 %v91, %v283
    %v285 = vpop.f32.mrf.mxu0
    %286 = vmatprep.mubr.f32.mxu0 0.0
    %287 = vmatmul.mubr.f32.gmra.mxu0 %v165
    %v288 = vpop.f32.mrf.mxu0
    %v289 = vadd.f32 %v96, %v288
    %v290 = vpop.f32.mrf.mxu0
    %291 = vmatprep.mubr.f32.mxu0 0.0
    %292 = vmatmul.mubr.f32.gmra.mxu0 %v168
    %v293 = vpop.f32.mrf.mxu0
    %v294 = vadd.f32 %v101, %v293
    %v295 = vpop.f32.mrf.mxu0
    %296 = vmatprep.mubr.f32.mxu0 0.0
    %297 = vmatmul.mubr.f32.gmra.mxu0 %v171
    %v298 = vpop.f32.mrf.mxu0
    %v299 = vadd.f32 %v106, %v298
    %v300 = vpop.f32.mrf.mxu0
    %301 = vmatprep.mubr.f32.mxu0 0.0
    %302 = vmatmul.mubr.f32.gmra.mxu0 %v174
    %v303 = vpop.f32.mrf.mxu0
    %v304 = vadd.f32 %v111, %v303
    %v305 = vpop.f32.mrf.mxu0
    %306 = vmatprep.mubr.f32.mxu0 0.0
    %307 = vmatmul.mubr.f32.gmra.mxu0 %v177
    %v308 = vpop.f32.mrf.mxu0
    %v309 = vadd.f32 %v116, %v308
    %v310 = vpop.f32.mrf.mxu0
    %311 = vmatprep.mubr.f32.mxu0 0.0
    %312 = vmatmul.mubr.f32.gmra.mxu0 %v180
    %v313 = vpop.f32.mrf.mxu0
    %v314 = vadd.f32 %v121, %v313
    %v315 = vpop.f32.mrf.mxu0
    %316 = vmatprep.mubr.f32.mxu0 0.0
    %317 = vmatmul.mubr.f32.gmra.mxu0 %v183
    %v318 = vpop.f32.mrf.mxu0
    %v319 = vadd.f32 %v126, %v318
    %v320 = vpop.f32.mrf.mxu0
    %321 = vmatprep.mubr.f32.mxu0 0.0
    %322 = vmatmul.mubr.f32.gmra.mxu0 %v186
    %v323 = vpop.f32.mrf.mxu0
    %v324 = vadd.f32 %v131, %v323
    %v325 = vpop.f32.mrf.mxu0
    %326 = vmatprep.mubr.f32.mxu0 0.0
    %327 = vmatmul.mubr.f32.gmra.mxu0 %v189
    %v328 = vpop.f32.mrf.mxu0
    %v329 = vadd.f32 %v136, %v328
    %v330 = vpop.f32.mrf.mxu0
    %331 = vmatprep.mubr.f32.mxu0 0.0
    %332 = vmatmul.mubr.f32.gmra.mxu0 %v192
    %v333 = vpop.f32.mrf.mxu0
    %v334 = vadd.f32 %v141, %v333
    %v335 = vpop.f32.mrf.mxu0
    %336 = vmatprep.mubr.f32.mxu0 0.0
    %337 = vmatmul.mubr.f32.gmra.mxu0 %v195
    %v338 = vpop.f32.mrf.mxu0
    %v339 = vadd.f32 %v146, %v338
    %v340 = vpop.f32.mrf.mxu0
    %341 = vdwg.mxu0
    %v342 = vld [vmem:[%s3] sm:$0xff]
    %v343 = vld [vmem:[%s3 + $0x8] sm:$0xff]
    %v344 = vld [vmem:[%s3 + $0x10] sm:$0xff]
    %v345 = vld [vmem:[%s3 + $0x18] sm:$0xff]
    %v346 = vld [vmem:[%s3 + $0x20] sm:$0xff]
    %v347 = vld [vmem:[%s3 + $0x28] sm:$0xff]
    %v348 = vld [vmem:[%s3 + $0x30] sm:$0xff]
    %v349 = vld [vmem:[%s3 + $0x38] sm:$0xff]
    %v350 = vld [vmem:[%s3 + $0x40] sm:$0xff]
    %v351 = vld [vmem:[%s3 + $0x48] sm:$0xff]
    %v352 = vld [vmem:[%s3 + $0x50] sm:$0xff]
    %v353 = vld [vmem:[%s3 + $0x58] sm:$0xff]
    %v354 = vld [vmem:[%s3 + $0x60] sm:$0xff]
    %v355 = vld [vmem:[%s3 + $0x68] sm:$0xff]
    %v356 = vld [vmem:[%s3 + $0x70] sm:$0xff]
    %v357 = vld [vmem:[%s3 + $0x78] sm:$0xff]
    %vm358 = vcmp.eq.s32.totalorder %v35, 0
    %v359 = vsel %vm358, 1, 0
    %v360 = vcvt.s32.f32 %v359
    %362 = vset.pattern.permute.xlu0 0
    %363 = vperm.xlu0 %362, %v342
    %v364 = vpop.permute.xlu0 %363
    %367 = vset.pattern.permute.xlu0 0
    %368 = vperm.xlu0 %367, %v343
    %v369 = vpop.permute.xlu0 %368
    %372 = vset.pattern.permute.xlu0 0
    %373 = vperm.xlu0 %372, %v344
    %v374 = vpop.permute.xlu0 %373
    %377 = vset.pattern.permute.xlu0 0
    %378 = vperm.xlu0 %377, %v345
    %v379 = vpop.permute.xlu0 %378
    %382 = vset.pattern.permute.xlu0 0
    %383 = vperm.xlu0 %382, %v346
    %v384 = vpop.permute.xlu0 %383
    %387 = vset.pattern.permute.xlu0 0
    %388 = vperm.xlu0 %387, %v347
    %v389 = vpop.permute.xlu0 %388
    %392 = vset.pattern.permute.xlu0 0
    %393 = vperm.xlu0 %392, %v348
    %v394 = vpop.permute.xlu0 %393
    %397 = vset.pattern.permute.xlu0 0
    %398 = vperm.xlu0 %397, %v349
    %v399 = vpop.permute.xlu0 %398
    %402 = vset.pattern.permute.xlu0 0
    %403 = vperm.xlu0 %402, %v350
    %v404 = vpop.permute.xlu0 %403
    %407 = vset.pattern.permute.xlu0 0
    %408 = vperm.xlu0 %407, %v351
    %v409 = vpop.permute.xlu0 %408
    %412 = vset.pattern.permute.xlu0 0
    %413 = vperm.xlu0 %412, %v352
    %v414 = vpop.permute.xlu0 %413
    %417 = vset.pattern.permute.xlu0 0
    %418 = vperm.xlu0 %417, %v353
    %v419 = vpop.permute.xlu0 %418
    %422 = vset.pattern.permute.xlu0 0
    %423 = vperm.xlu0 %422, %v354
    %v424 = vpop.permute.xlu0 %423
    %427 = vset.pattern.permute.xlu0 0
    %428 = vperm.xlu0 %427, %v355
    %v429 = vpop.permute.xlu0 %428
    %432 = vset.pattern.permute.xlu0 0
    %433 = vperm.xlu0 %432, %v356
    %v434 = vpop.permute.xlu0 %433
    %437 = vset.pattern.permute.xlu0 0
    %438 = vperm.xlu0 %437, %v357
    %v439 = vpop.permute.xlu0 %438
    %v442 = vlaneseq
    %v443 = vshrl.u32 %v442, 7
    %v444 = vsub.s32 0, %v443
    %v445 = vrot.slane %v360, %v444
    %v447 = vmul.f32 %v364, %v445
    %v448 = vmul.f32 %v369, %v445
    %v449 = vmul.f32 %v374, %v445
    %v450 = vmul.f32 %v379, %v445
    %v451 = vmul.f32 %v384, %v445
    %v452 = vmul.f32 %v389, %v445
    %v453 = vmul.f32 %v394, %v445
    %v454 = vmul.f32 %v399, %v445
    %v455 = vmul.f32 %v404, %v445
    %v456 = vmul.f32 %v409, %v445
    %v457 = vmul.f32 %v414, %v445
    %v458 = vmul.f32 %v419, %v445
    %v459 = vmul.f32 %v424, %v445
    %v460 = vmul.f32 %v429, %v445
    %v461 = vmul.f32 %v434, %v445
    %v462 = vmul.f32 %v439, %v445
    %v463 = vadd.f32 %v264, %v447
    %v464 = vadd.f32 %v269, %v448
    %v465 = vadd.f32 %v274, %v449
    %v466 = vadd.f32 %v279, %v450
    %v467 = vadd.f32 %v284, %v451
    %v468 = vadd.f32 %v289, %v452
    %v469 = vadd.f32 %v294, %v453
    %v470 = vadd.f32 %v299, %v454
    %v471 = vadd.f32 %v304, %v455
    %v472 = vadd.f32 %v309, %v456
    %v473 = vadd.f32 %v314, %v457
    %v474 = vadd.f32 %v319, %v458
    %v475 = vadd.f32 %v324, %v459
    %v476 = vadd.f32 %v329, %v460
    %v477 = vadd.f32 %v334, %v461
    %v478 = vadd.f32 %v339, %v462
    %vm479 = vcmp.eq.s32.totalorder %v35, 1
    %v480 = vsel %vm479, 1, 0
    %v481 = vcvt.s32.f32 %v480
    %482 = vset.pattern.permute.xlu0 1
    %483 = vperm.xlu0 %482, %v342
    %v484 = vpop.permute.xlu0 %483
    %486 = vset.pattern.permute.xlu0 1
    %487 = vperm.xlu0 %486, %v343
    %v488 = vpop.permute.xlu0 %487
    %490 = vset.pattern.permute.xlu0 1
    %491 = vperm.xlu0 %490, %v344
    %v492 = vpop.permute.xlu0 %491
    %494 = vset.pattern.permute.xlu0 1
    %495 = vperm.xlu0 %494, %v345
    %v496 = vpop.permute.xlu0 %495
    %498 = vset.pattern.permute.xlu0 1
    %499 = vperm.xlu0 %498, %v346
    %v500 = vpop.permute.xlu0 %499
    %502 = vset.pattern.permute.xlu0 1
    %503 = vperm.xlu0 %502, %v347
    %v504 = vpop.permute.xlu0 %503
    %506 = vset.pattern.permute.xlu0 1
    %507 = vperm.xlu0 %506, %v348
    %v508 = vpop.permute.xlu0 %507
    %510 = vset.pattern.permute.xlu0 1
    %511 = vperm.xlu0 %510, %v349
    %v512 = vpop.permute.xlu0 %511
    %514 = vset.pattern.permute.xlu0 1
    %515 = vperm.xlu0 %514, %v350
    %v516 = vpop.permute.xlu0 %515
    %518 = vset.pattern.permute.xlu0 1
    %519 = vperm.xlu0 %518, %v351
    %v520 = vpop.permute.xlu0 %519
    %522 = vset.pattern.permute.xlu0 1
    %523 = vperm.xlu0 %522, %v352
    %v524 = vpop.permute.xlu0 %523
    %526 = vset.pattern.permute.xlu0 1
    %527 = vperm.xlu0 %526, %v353
    %v528 = vpop.permute.xlu0 %527
    %530 = vset.pattern.permute.xlu0 1
    %531 = vperm.xlu0 %530, %v354
    %v532 = vpop.permute.xlu0 %531
    %534 = vset.pattern.permute.xlu0 1
    %535 = vperm.xlu0 %534, %v355
    %v536 = vpop.permute.xlu0 %535
    %538 = vset.pattern.permute.xlu0 1
    %539 = vperm.xlu0 %538, %v356
    %v540 = vpop.permute.xlu0 %539
    %542 = vset.pattern.permute.xlu0 1
    %543 = vperm.xlu0 %542, %v357
    %v544 = vpop.permute.xlu0 %543
    %v547 = vlaneseq
    %v548 = vshrl.u32 %v547, 7
    %v549 = vsub.s32 0, %v548
    %v550 = vrot.slane %v481, %v549
    %v552 = vmul.f32 %v484, %v550
    %v553 = vmul.f32 %v488, %v550
    %v554 = vmul.f32 %v492, %v550
    %v555 = vmul.f32 %v496, %v550
    %v556 = vmul.f32 %v500, %v550
    %v557 = vmul.f32 %v504, %v550
    %v558 = vmul.f32 %v508, %v550
    %v559 = vmul.f32 %v512, %v550
    %v560 = vmul.f32 %v516, %v550
    %v561 = vmul.f32 %v520, %v550
    %v562 = vmul.f32 %v524, %v550
    %v563 = vmul.f32 %v528, %v550
    %v564 = vmul.f32 %v532, %v550
    %v565 = vmul.f32 %v536, %v550
    %v566 = vmul.f32 %v540, %v550
    %v567 = vmul.f32 %v544, %v550
    %v568 = vadd.f32 %v463, %v552
    %v569 = vadd.f32 %v464, %v553
    %v570 = vadd.f32 %v465, %v554
    %v571 = vadd.f32 %v466, %v555
    %v572 = vadd.f32 %v467, %v556
    %v573 = vadd.f32 %v468, %v557
    %v574 = vadd.f32 %v469, %v558
    %v575 = vadd.f32 %v470, %v559
    %v576 = vadd.f32 %v471, %v560
    %v577 = vadd.f32 %v472, %v561
    %v578 = vadd.f32 %v473, %v562
    %v579 = vadd.f32 %v474, %v563
    %v580 = vadd.f32 %v475, %v564
    %v581 = vadd.f32 %v476, %v565
    %v582 = vadd.f32 %v477, %v566
    %v583 = vadd.f32 %v478, %v567
    %v584 = vmax.f32 %v568, 0.0
    %v585 = vmax.f32 %v569, 0.0
    %v586 = vmax.f32 %v570, 0.0
    %v587 = vmax.f32 %v571, 0.0
    %v588 = vmax.f32 %v572, 0.0
    %v589 = vmax.f32 %v573, 0.0
    %v590 = vmax.f32 %v574, 0.0
    %v591 = vmax.f32 %v575, 0.0
    %v592 = vmax.f32 %v576, 0.0
    %v593 = vmax.f32 %v577, 0.0
    %v594 = vmax.f32 %v578, 0.0
    %v595 = vmax.f32 %v579, 0.0
    %v596 = vmax.f32 %v580, 0.0
    %v597 = vmax.f32 %v581, 0.0
    %v598 = vmax.f32 %v582, 0.0
    %v599 = vmax.f32 %v583, 0.0
    %v600 = vld [vmem:[%s5] sm:$0xff]
    %v601 = vld [vmem:[%s5 + $0x8] sm:$0xff]
    %v602 = vld [vmem:[%s5 + $0x10] sm:$0xff]
    %v603 = vld [vmem:[%s5 + $0x18] sm:$0xff]
    %v604 = vld [vmem:[%s5 + $0x20] sm:$0xff]
    %v605 = vld [vmem:[%s5 + $0x28] sm:$0xff]
    %v606 = vld [vmem:[%s5 + $0x30] sm:$0xff]
    %v607 = vld [vmem:[%s5 + $0x38] sm:$0xff]
    %v608 = vld [vmem:[%s6] sm:$0xff]
    %v609 = vld [vmem:[%s6 + $0x8] sm:$0xff]
    %v610 = vld [vmem:[%s6 + $0x10] sm:$0xff]
    %v611 = vld [vmem:[%s6 + $0x18] sm:$0xff]
    %v612 = vld [vmem:[%s6 + $0x20] sm:$0xff]
    %v613 = vld [vmem:[%s6 + $0x28] sm:$0xff]
    %v614 = vld [vmem:[%s6 + $0x30] sm:$0xff]
    %v615 = vld [vmem:[%s6 + $0x38] sm:$0xff]
    %617 = vset.pattern.permute.xlu0 0
    %618 = vperm.xlu0 %617, %v608
    %v619 = vpop.permute.xlu0 %618
    %622 = vset.pattern.permute.xlu0 0
    %623 = vperm.xlu0 %622, %v609
    %v624 = vpop.permute.xlu0 %623
    %627 = vset.pattern.permute.xlu0 0
    %628 = vperm.xlu0 %627, %v610
    %v629 = vpop.permute.xlu0 %628
    %632 = vset.pattern.permute.xlu0 0
    %633 = vperm.xlu0 %632, %v611
    %v634 = vpop.permute.xlu0 %633
    %637 = vset.pattern.permute.xlu0 0
    %638 = vperm.xlu0 %637, %v612
    %v639 = vpop.permute.xlu0 %638
    %642 = vset.pattern.permute.xlu0 0
    %643 = vperm.xlu0 %642, %v613
    %v644 = vpop.permute.xlu0 %643
    %647 = vset.pattern.permute.xlu0 0
    %648 = vperm.xlu0 %647, %v614
    %v649 = vpop.permute.xlu0 %648
    %652 = vset.pattern.permute.xlu0 0
    %653 = vperm.xlu0 %652, %v615
    %v654 = vpop.permute.xlu0 %653
    %656 = vmatprep.subr.mxu0 0.0
    %657 = vmatpush1.msra.mxu0 %v599
    %658 = vmatprep.subr.mxu0 0.0
    %659 = vmatpush1.msra.mxu0 %v598
    %660 = vmatprep.subr.mxu0 0.0
    %661 = vmatpush1.msra.mxu0 %v597
    %662 = vmatprep.subr.mxu0 0.0
    %663 = vmatpush1.msra.mxu0 %v596
    %664 = vmatprep.subr.mxu0 0.0
    %665 = vmatpush1.msra.mxu0 %v595
    %666 = vmatprep.subr.mxu0 0.0
    %667 = vmatpush1.msra.mxu0 %v594
    %668 = vmatprep.subr.mxu0 0.0
    %669 = vmatpush1.msra.mxu0 %v593
    %670 = vmatprep.subr.mxu0 0.0
    %671 = vmatpush1.msra.mxu0 %v592
    %672 = vmatprep.subr.mxu0 0.0
    %673 = vmatpush1.msra.mxu0 %v591
    %674 = vmatprep.subr.mxu0 0.0
    %675 = vmatpush1.msra.mxu0 %v590
    %676 = vmatprep.subr.mxu0 0.0
    %677 = vmatpush1.msra.mxu0 %v589
    %678 = vmatprep.subr.mxu0 0.0
    %679 = vmatpush1.msra.mxu0 %v588
    %680 = vmatprep.subr.mxu0 0.0
    %681 = vmatpush1.msra.mxu0 %v587
    %682 = vmatprep.subr.mxu0 0.0
    %683 = vmatpush1.msra.mxu0 %v586
    %684 = vmatprep.subr.mxu0 0.0
    %685 = vmatpush1.msra.mxu0 %v585
    %686 = vmatprep.subr.mxu0 0.0
    %687 = vmatpush1.msra.mxu0 %v584
    %688 = vmatprep.subr.mxu0 0.0
    %689 = vmatpush2.msra.mxu0 0.0
    %690 = vmatprep.subr.mxu0 0.0
    %691 = vmatpush2.msra.mxu0 0.0
    %692 = vmatprep.subr.mxu0 0.0
    %693 = vmatpush2.msra.mxu0 0.0
    %694 = vmatprep.subr.mxu0 0.0
    %695 = vmatpush2.msra.mxu0 0.0
    %696 = vmatprep.subr.mxu0 0.0
    %697 = vmatpush2.msra.mxu0 0.0
    %698 = vmatprep.subr.mxu0 0.0
    %699 = vmatpush2.msra.mxu0 0.0
    %700 = vmatprep.subr.mxu0 0.0
    %701 = vmatpush2.msra.mxu0 0.0
    %702 = vmatprep.subr.mxu0 0.0
    %703 = vmatpush2.msra.mxu0 0.0
    %704 = vmatprep.subr.mxu0 0.0
    %705 = vmatpush2.msra.mxu0 0.0
    %706 = vmatprep.subr.mxu0 0.0
    %707 = vmatpush2.msra.mxu0 0.0
    %708 = vmatprep.subr.mxu0 0.0
    %709 = vmatpush2.msra.mxu0 0.0
    %710 = vmatprep.subr.mxu0 0.0
    %711 = vmatpush2.msra.mxu0 0.0
    %712 = vmatprep.subr.mxu0 0.0
    %713 = vmatpush2.msra.mxu0 0.0
    %714 = vmatprep.subr.mxu0 0.0
    %715 = vmatpush2.msra.mxu0 0.0
    %716 = vmatprep.subr.mxu0 0.0
    %717 = vmatpush2.msra.mxu0 0.0
    %718 = vmatprep.subr.mxu0 0.0
    %719 = vmatpush2.msra.mxu0 0.0
    %720 = vmatprep.mubr.f32.mxu0 0.0
    %721 = vmatmul.mubr.f32.gmra.mxu0 %v600
    %v722 = vpop.f32.mrf.mxu0
    %v723 = vadd.f32 %v619, %v722
    %v724 = vpop.f32.mrf.mxu0
    %725 = vmatprep.mubr.f32.mxu0 0.0
    %726 = vmatmul.mubr.f32.gmra.mxu0 %v601
    %v727 = vpop.f32.mrf.mxu0
    %v728 = vadd.f32 %v624, %v727
    %v729 = vpop.f32.mrf.mxu0
    %730 = vmatprep.mubr.f32.mxu0 0.0
    %731 = vmatmul.mubr.f32.gmra.mxu0 %v602
    %v732 = vpop.f32.mrf.mxu0
    %v733 = vadd.f32 %v629, %v732
    %v734 = vpop.f32.mrf.mxu0
    %735 = vmatprep.mubr.f32.mxu0 0.0
    %736 = vmatmul.mubr.f32.gmra.mxu0 %v603
    %v737 = vpop.f32.mrf.mxu0
    %v738 = vadd.f32 %v634, %v737
    %v739 = vpop.f32.mrf.mxu0
    %740 = vmatprep.mubr.f32.mxu0 0.0
    %741 = vmatmul.mubr.f32.gmra.mxu0 %v604
    %v742 = vpop.f32.mrf.mxu0
    %v743 = vadd.f32 %v639, %v742
    %v744 = vpop.f32.mrf.mxu0
    %745 = vmatprep.mubr.f32.mxu0 0.0
    %746 = vmatmul.mubr.f32.gmra.mxu0 %v605
    %v747 = vpop.f32.mrf.mxu0
    %v748 = vadd.f32 %v644, %v747
    %v749 = vpop.f32.mrf.mxu0
    %750 = vmatprep.mubr.f32.mxu0 0.0
    %751 = vmatmul.mubr.f32.gmra.mxu0 %v606
    %v752 = vpop.f32.mrf.mxu0
    %v753 = vadd.f32 %v649, %v752
    %v754 = vpop.f32.mrf.mxu0
    %755 = vmatprep.mubr.f32.mxu0 0.0
    %756 = vmatmul.mubr.f32.gmra.mxu0 %v607
    %v757 = vpop.f32.mrf.mxu0
    %v758 = vadd.f32 %v654, %v757
    %v759 = vpop.f32.mrf.mxu0
    %760 = vdwg.mxu0
    %v761 = vmax.f32 %v723, 0.0
    %v762 = vmax.f32 %v728, 0.0
    %v763 = vmax.f32 %v733, 0.0
    %v764 = vmax.f32 %v738, 0.0
    %v765 = vmax.f32 %v743, 0.0
    %v766 = vmax.f32 %v748, 0.0
    %v767 = vmax.f32 %v753, 0.0
    %v768 = vmax.f32 %v758, 0.0
    %v769 = vld [vmem:[%s7] sm:$0xff]
    %v770 = vld [vmem:[%s7 + $0x8] sm:$0xff]
    %v771 = vld [vmem:[%s7 + $0x10] sm:$0xff]
    %v772 = vld [vmem:[%s7 + $0x18] sm:$0xff]
    %v773 = vld [vmem:[%s7 + $0x20] sm:$0xff]
    %v774 = vld [vmem:[%s7 + $0x28] sm:$0xff]
    %v775 = vld [vmem:[%s7 + $0x30] sm:$0xff]
    %v776 = vld [vmem:[%s7 + $0x38] sm:$0xff]
    %778 = vset.pattern.permute.xlu0 0
    %779 = vperm.xlu0 %778, %v769
    %v780 = vpop.permute.xlu0 %779
    %783 = vset.pattern.permute.xlu0 0
    %784 = vperm.xlu0 %783, %v770
    %v785 = vpop.permute.xlu0 %784
    %788 = vset.pattern.permute.xlu0 0
    %789 = vperm.xlu0 %788, %v771
    %v790 = vpop.permute.xlu0 %789
    %793 = vset.pattern.permute.xlu0 0
    %794 = vperm.xlu0 %793, %v772
    %v795 = vpop.permute.xlu0 %794
    %798 = vset.pattern.permute.xlu0 0
    %799 = vperm.xlu0 %798, %v773
    %v800 = vpop.permute.xlu0 %799
    %803 = vset.pattern.permute.xlu0 0
    %804 = vperm.xlu0 %803, %v774
    %v805 = vpop.permute.xlu0 %804
    %808 = vset.pattern.permute.xlu0 0
    %809 = vperm.xlu0 %808, %v775
    %v810 = vpop.permute.xlu0 %809
    %813 = vset.pattern.permute.xlu0 0
    %814 = vperm.xlu0 %813, %v776
    %v815 = vpop.permute.xlu0 %814
    %v817 = vmul.f32 %v761, %v780
    %v818 = vmul.f32 %v762, %v785
    %v819 = vmul.f32 %v763, %v790
    %v820 = vmul.f32 %v764, %v795
    %v821 = vmul.f32 %v765, %v800
    %v822 = vmul.f32 %v766, %v805
    %v823 = vmul.f32 %v767, %v810
    %v824 = vmul.f32 %v768, %v815
    %v825 = vadd.f32 %v817, %v818
    %v826 = vadd.f32 %v825, %v819
    %v827 = vadd.f32 %v826, %v820
    %v828 = vadd.f32 %v827, %v821
    %v829 = vadd.f32 %v828, %v822
    %v830 = vadd.f32 %v829, %v823
    %v831 = vadd.f32 %v830, %v824
    %v832 = vrot.slane %v831, 4
    %v833 = vadd.f32 %v831, %v832
    %v834 = vrot.slane %v833, 2
    %v835 = vadd.f32 %v833, %v834
    %v836 = vrot.slane %v835, 1
    %v837 = vadd.f32 %v835, %v836
    %s838 = sld [smem:[#allocation2]]
    %v839 = vstv %s838
    %v840 = vadd.f32 %v837, %v839
    %v841 = vxor.u32 %v840, 2147483648
    %v842 = vmul.f32 %v841, 1.442695
    %v843 = vpow.pop %v842
    %v844 = vadd.f32 %v843, 1.0
    %v845 = vrcp.pop %v844
    %v846 = vmul.f32 1.0, %v845
    %847 = vst [vmem:[#allocation3] sm:$0x1] %v846
    // Predicated region
    $region38: #{tpu_custom_call.1} parent=1 // pred_check
      _
    $region39: #{tpu_custom_call.1} parent=1 // pred_check_branch
      %849 = sbr.rel (0) target = $region41
    $region40: #{tpu_custom_call.1} parent=1 // pred_region
      %s851 = ssub.s32 16, 16
      %852 = vsyncadd [#allocation4], %s851
      %s854 = sshll.u32 [#allocation3], 4
      %s855 = int_to_ptr.vmem [resolvable:$true] %s854
      %857 = dma.vmem_to_hbm [thread:$0]  %s855, 16, %s9, [#allocation4]
    $region41: #{tpu_custom_call.1} parent=1 // pred_fallthru
      _
    // Predicated region
    $region42: #{tpu_custom_call.1} parent=1 // pred_check
      _
    $region43: #{tpu_custom_call.1} parent=1 // pred_check_branch
      %859 = sbr.rel (0) target = $region45
    $region44: #{tpu_custom_call.1} parent=1 // pred_region
      %860 = dma.done [#allocation4], 16
    $region45: #{tpu_custom_call.1} parent=1 // pred_fallthru
      _
    %861 = vsyncpa [#allocation4], 1

</llo_original>
